<compile_context>
chip_gen: v6e
topology: v6e:2x2x1
jax: 0.10.0
libtpu: 0.0.40
codegen_flags: <defaults>
</compile_context>

<pallas_src>
import functools

import jax
import jax.numpy as jnp
from jax.experimental import pallas as pl
from jax.experimental.pallas import tpu as pltpu

_LANE = 128


def _round_up(x, m):
    return ((x + m - 1) // m) * m


def _pick_tiles(tile_cands, l_itemsize, lanes, gcols, y_cols, budget):
    """Largest (tm, tk) pair (row tile, contraction tile) fitting the budget."""

    def need(tm, tk):
        n_l = 2 * tm * tk * l_itemsize        # streamed L tile (double buffered)
        n_x = 2 * tk * lanes * 4              # streamed RHS tile
        n_g = 2 * lanes * gcols * 4           # grouping matrix (constant index)
        n_acc = tm * lanes * 4                # f32 accumulator scratch
        n_ps = 2 * 8 * gcols * 4              # partial-sum output block
        n_y = 2 * tm * y_cols * 4             # optional Y output block
        return n_l + n_x + n_g + n_acc + n_ps + n_y + (2 << 20)  # compiler margin

    for tm in tile_cands:
        for tk in tile_cands:
            if need(tm, tk) <= budget:
                return tm, tk, need(tm, tk)
    tm = tk = tile_cands[-1]
    return tm, tk, need(tm, tk)


def _lap_kernel(l_ref, x_ref, g_ref, *rest, emit_y):
    """Grid point (row tile i, contraction tile k):

        acc += L[i, k] @ X[k]                       (f32 accumulation)
      on the last k:
        Y = acc ; optionally emit Y[:, :y_cols]     (L @ pred slab)
        norms = sqrt((Y*Y) @ G)                     per-(vertex, batch) L2 norm
        psum  = per-tile row-sum of norms (row 0 of an (8, gcols) block)
    """
    if emit_y:
        psum_ref, y_ref, acc_ref = rest
    else:
        psum_ref, acc_ref = rest

    k = pl.program_id(1)

    @pl.when(k == 0)
    def _():
        acc_ref[...] = jnp.zeros_like(acc_ref)

    # L is streamed in bf16 (small-integer entries, exact) or f32; upcast so
    # the MXU accumulation stays full f32.
    l_tile = l_ref[...].astype(jnp.float32)
    acc_ref[...] += jnp.dot(l_tile, x_ref[...],
                            preferred_element_type=jnp.float32)

    @pl.when(k == pl.num_programs(1) - 1)
    def _():
        y = acc_ref[...]
        if emit_y:
            # Lane-aligned prefix slice: the pred half of the packed RHS.
            y_ref[...] = y[:, : y_ref.shape[-1]]
        # Per-(vertex, batch) sum of squares via a 0/1 grouping matmul (keeps
        # the epilogue lane dense and zeroes all pad columns), sqrt on vregs,
        # then reduce this row tile to a tiny partial-sum block.
        s = jnp.dot(y * y, g_ref[...], preferred_element_type=jnp.float32)
        norms = jnp.sqrt(s)                                   # (tm, gcols)
        tile_sum = jnp.sum(norms, axis=0, keepdims=True)      # (1, gcols)
        rows = jax.lax.broadcasted_iota(jnp.int32, psum_ref.shape, 0)
        psum_ref[...] = jnp.where(
            rows == 0, jnp.broadcast_to(tile_sum, psum_ref.shape), 0.0)


def build_laplacian(adj_dense):
    """Replicates the torch __init__: binarize adjacency, L = diag(deg) - A."""
    adj = (adj_dense != 0).astype(jnp.float32)
    dg = jnp.sum(adj, axis=-1)
    return jnp.diag(dg) - adj


class LaplacianCTFPallas:
    """Pallas port of the torch LaplacianCTF module.

    The Laplacian is padded and cast exactly once here and reused on every
    forward call (the streamed L is the true HBM bottleneck of this loss).
    """

    def __init__(self, adj_dense, l_dtype=jnp.bfloat16):
        ls = build_laplacian(adj_dense)
        n = int(ls.shape[0])
        self.N = n

        # bf16 keeps Laplacian entries exact only while vertex degrees <= 256.
        max_deg = float(jnp.max(jnp.diagonal(ls)))
        if l_dtype == jnp.bfloat16 and max_deg > 256:
            l_dtype = jnp.float32
        self.l_dtype = l_dtype
        self.l_itemsize = jnp.dtype(l_dtype).itemsize

        # Generation-aware VMEM budget (~96 MiB on v5e/v6e, ~48 MiB on v7x).
        cap = 64 << 20
        try:
            info = pltpu.get_tpu_info()
            cap = int(getattr(info, "vmem_capacity_bytes", cap))
        except Exception:
            pass
        self.vmem_budget = min((cap * 3) // 4, 112 << 20)

        # Row padding granularity: the largest tile candidate whose zero
        # padding keeps streamed-L bytes within ~1.35x of the 128-padded size.
        n128 = _round_up(n, _LANE)
        cands = [c for c in (2048, 1024, 512, 256, 128) if c <= n128]
        n_pad = n128
        for c in cands:
            cand_pad = _round_up(n, c)
            if cand_pad * cand_pad <= (n128 * n128 * 27) // 20:
                n_pad = cand_pad
                break
        self.n_pad = n_pad
        self.tile_cands = [c for c in cands if n_pad % c == 0]

        # Pad + cast L once, directly in the streaming dtype.  Padded rows and
        # columns are zero, so they contribute nothing to any result.
        ls_cast = ls.astype(l_dtype)
        self.ls_pad = jnp.zeros((n_pad, n_pad), l_dtype).at[:n, :n].set(ls_cast)

    # ----------------------------------------------------------------- call
    def __call__(self, verts_pred, verts_gt, smooth=False):
        B, N, D = verts_pred.shape
        assert N == self.N and verts_gt.shape == (B, N, D)
        bd = B * D
        bd_pad = _round_up(bd, _LANE)
        gcols = _round_up(B, _LANE)
        n_pad = self.n_pad
        lanes = 2 * bd_pad if smooth else bd_pad
        diff_off = bd_pad if smooth else 0

        # Lane-dense packed RHS: column diff_off + b*D + d holds
        # (pred - gt)[b, :, d]; when smooth, the lane-aligned FIRST half holds
        # pred so pass 1 can emit just the L@pred slab for pass 2.
        diff_t = jnp.transpose(verts_pred - verts_gt, (1, 0, 2)).reshape(N, bd)
        x = jnp.zeros((n_pad, lanes), jnp.float32)
        x = x.at[:N, diff_off:diff_off + bd].set(diff_t.astype(jnp.float32))
        if smooth:
            pred_t = jnp.transpose(verts_pred, (1, 0, 2)).reshape(N, bd)
            x = x.at[:N, :bd].set(pred_t.astype(jnp.float32))

        # 0/1 grouping matrix: output column b sums the D squared coords of
        # batch b taken from the diff columns.
        col = jnp.arange(lanes, dtype=jnp.int32)[:, None]
        out_col = jnp.arange(gcols, dtype=jnp.int32)[None, :]
        g_diff = (((col - diff_off) // D == out_col)
                  & (col >= diff_off) & (col < diff_off + bd)).astype(jnp.float32)

        denom = float(B * N)
        psum, y_pred = self._pass(x, g_diff, emit_y=smooth, y_cols=bd_pad)
        loss = jnp.sum(psum) / denom
        if not smooth:
            return loss, None

        # Second pass: Z = L @ (L @ pred); the RHS is only the pred slab, so no
        # diff columns are streamed or contracted.
        col2 = jnp.arange(bd_pad, dtype=jnp.int32)[:, None]
        g_pred = ((col2 // D == out_col) & (col2 < bd)).astype(jnp.float32)
        psum2, _ = self._pass(y_pred, g_pred, emit_y=False, y_cols=0)
        loss_smooth = jnp.sum(psum2) / denom
        return loss, loss_smooth

    # ----------------------------------------------------------------- pass
    def _pass(self, x, g, *, emit_y, y_cols):
        n_pad = self.n_pad
        lanes = x.shape[1]
        gcols = g.shape[1]
        tm, tk, need = _pick_tiles(self.tile_cands, self.l_itemsize, lanes,
                                   gcols, y_cols if emit_y else 0,
                                   self.vmem_budget)
        grid = (n_pad // tm, n_pad // tk)

        out_shape = [jax.ShapeDtypeStruct((grid[0] * 8, gcols), jnp.float32)]
        out_specs = [pl.BlockSpec((8, gcols), lambda i, k: (i, 0))]
        if emit_y:
            out_shape.append(jax.ShapeDtypeStruct((n_pad, y_cols), jnp.float32))
            out_specs.append(pl.BlockSpec((tm, y_cols), lambda i, k: (i, 0)))

        # Only raise the scoped VMEM limit when the working set exceeds the
        # strictest default (v5e: 16 MiB); never exceed the generation budget.
        vmem_limit = None
        if need > (16 << 20):
            vmem_limit = int(min(max(need, 32 << 20), self.vmem_budget))

        # TODO(synk): sweep pipeline_mode=pl.Buffered(3) on the streamed L spec
        # if profiling shows exposed DMA at small tiles (most relevant on v7x).
        results = pl.pallas_call(
            functools.partial(_lap_kernel, emit_y=emit_y),
            out_shape=tuple(out_shape),
            grid_spec=pltpu.PrefetchScalarGridSpec(
                num_scalar_prefetch=0,
                grid=grid,
                in_specs=[
                    # Streamed Laplacian tile: the dominant HBM traffic.
                    pl.BlockSpec((tm, tk), lambda i, k: (i, k)),
                    # Packed verts RHS tile: streams along k only.
                    pl.BlockSpec((tk, lanes), lambda i, k: (k, 0)),
                    # Grouping matrix: constant block index, fetched once.
                    pl.BlockSpec((lanes, gcols), lambda i, k: (0, 0)),
                ],
                out_specs=tuple(out_specs),
                scratch_shapes=[pltpu.VMEM((tm, lanes), jnp.float32)],
            ),
            compiler_params=pltpu.CompilerParams(
                # Row tiles are independent -> shard across TensorCores; the K
                # axis carries the accumulator -> "arbitrary".
                dimension_semantics=("parallel", "arbitrary"),
                vmem_limit_bytes=vmem_limit,
            ),
        )(self.ls_pad, x, g)

        psum = results[0]
        y = results[1] if emit_y else None
        return psum, y


# --------------------------------------------------------------------- refs
def _reference(ls, verts_pred, verts_gt, smooth=False):
    """Pure-JAX mirror of the torch forward (same operation order)."""
    lp = jnp.einsum('nm,bmd->bnd', ls, verts_pred)
    lg = jnp.einsum('nm,bmd->bnd', ls, verts_gt)
    loss = jnp.mean(jnp.linalg.norm(lp - lg, axis=-1))
    if smooth:
        lpp = jnp.einsum('nm,bmd->bnd', ls, lp)
        return loss, jnp.mean(jnp.linalg.norm(lpp, axis=-1))
    return loss, None


def _reference_fused(ls, verts_pred, verts_gt):
    """Same math with the kernel's operation order: L @ (pred - gt)."""
    ld = jnp.einsum('nm,bmd->bnd', ls, verts_pred - verts_gt)
    return jnp.mean(jnp.linalg.norm(ld, axis=-1))


if __name__ == "__main__":
    base_key = jax.random.PRNGKey(0)

    def run_case(N, B=2, D=3):
        k_adj, k_pred, k_gt = jax.random.split(jax.random.fold_in(base_key, N), 3)

        # Deterministic synthetic adjacency (symmetric, zero diagonal).
        raw = jax.random.uniform(k_adj, (N, N)) < 0.15
        adj = jnp.logical_or(raw, raw.T).astype(jnp.float32)
        adj = adj * (1.0 - jnp.eye(N, dtype=jnp.float32))
        ls = build_laplacian(adj)

        verts_pred = jax.random.normal(k_pred, (B, N, D), dtype=jnp.float32)
        verts_gt = jax.random.normal(k_gt, (B, N, D), dtype=jnp.float32)

        # Default path: bf16-streamed Laplacian (cached once in the ctor).
        model = LaplacianCTFPallas(adj)
        loss, none = model(verts_pred, verts_gt, smooth=False)
        jax.block_until_ready(loss)
        assert none is None
        loss_s, smooth_s = model(verts_pred, verts_gt, smooth=True)
        jax.block_until_ready((loss_s, smooth_s))

        # f32-streamed Laplacian path (coverage for the fallback branch).
        model_f32 = LaplacianCTFPallas(adj, l_dtype=jnp.float32)
        loss_f32, _ = model_f32(verts_pred, verts_gt, smooth=False)
        jax.block_until_ready(loss_f32)

        ref_loss, _ = _reference(ls, verts_pred, verts_gt, smooth=False)
        _, ref_smooth = _reference(ls, verts_pred, verts_gt, smooth=True)
        ref_fused = _reference_fused(ls, verts_pred, verts_gt)

        # Same operation order as the kernel -> tight.
        assert jnp.allclose(loss, ref_fused, rtol=1e-4, atol=1e-5)
        # torch order (L@pred - L@gt) vs fused L@(pred-gt): identical math, but
        # TPU default f32 matmul precision can separate the orderings slightly.
        assert jnp.allclose(loss, ref_loss, rtol=2e-3, atol=2e-3)
        # Main loss is independent of the extra pred lanes used by smooth=True.
        assert jnp.allclose(loss_s, loss, rtol=1e-5, atol=1e-6)
        # Smoothness loss follows the torch operation order.
        assert jnp.allclose(smooth_s, ref_smooth, rtol=1e-3, atol=1e-4)
        # bf16-streamed L is exact (small-integer entries) -> matches f32 L.
        assert jnp.allclose(loss, loss_f32, rtol=1e-5, atol=1e-6)

    run_case(N=64)    # single-tile grid (1, 1)
    run_case(N=300)   # multi-tile grid (3, 3): exercises K-axis accumulation
    print("KERNEL_OK")
</pallas_src>

<mosaic_0001>
module attributes {stable_mosaic.version = 11 : i64} {
  func.func @_lap_kernel(%arg0: i32, %arg1: i32, %arg2: memref<128x128xbf16, #tpu.memory_space<vmem>>, %arg3: memref<128x128xf32, #tpu.memory_space<vmem>>, %arg4: memref<128x128xf32, #tpu.memory_space<vmem>>, %arg5: memref<8x128xf32, #tpu.memory_space<vmem>>, %arg6: memref<128x128xf32, #tpu.memory_space<vmem>>) attributes {dimension_semantics = [#tpu.dimension_semantics<parallel>, #tpu.dimension_semantics<arbitrary>], iteration_bounds = array<i64: 1, 1>, scalar_prefetch = 0 : i64, scratch_operands = 1 : i64, tpu.core_type = #tpu.core_type<tc>, window_params = [{transform_indices = @transform_0, window_bounds = array<i64: 128, 128>}, {transform_indices = @transform_1, window_bounds = array<i64: 128, 128>}, {pipeline_mode = #tpu.pipeline_mode<synchronous>, transform_indices = @transform_2, window_bounds = array<i64: 128, 128>}, {transform_indices = @transform_3, window_bounds = array<i64: 8, 128>}]} {
    %c0_i32 = arith.constant 0 : i32
    %0 = arith.cmpi eq, %arg1, %c0_i32 : i32
    %1 = arith.extui %0 : i1 to i32
    %c0_i32_0 = arith.constant 0 : i32
    %2 = arith.cmpi ne, %1, %c0_i32_0 : i32
    scf.if %2 {
      %cst_10 = arith.constant 0.000000e+00 : f32
      %13 = vector.broadcast %cst_10 : f32 to vector<128x128xf32>
      %c0_11 = arith.constant 0 : index
      %c0_12 = arith.constant 0 : index
      %14 = vector.load %arg6[%c0_11, %c0_12] : memref<128x128xf32, #tpu.memory_space<vmem>>, vector<128x128xf32>
      tpu.vector_store %arg6[%c0_11, %c0_12], %13 {strides = array<i32>} : memref<128x128xf32, #tpu.memory_space<vmem>>, vector<128x128xf32>,
    } else {
    }
    %c0 = arith.constant 0 : index
    %c0_1 = arith.constant 0 : index
    %3 = vector.load %arg2[%c0, %c0_1] : memref<128x128xbf16, #tpu.memory_space<vmem>>, vector<128x128xbf16>
    %4 = arith.extf %3 : vector<128x128xbf16> to vector<128x128xf32>
    %c0_2 = arith.constant 0 : index
    %c0_3 = arith.constant 0 : index
    %5 = vector.load %arg6[%c0_2, %c0_3] : memref<128x128xf32, #tpu.memory_space<vmem>>, vector<128x128xf32>
    %c0_4 = arith.constant 0 : index
    %c0_5 = arith.constant 0 : index
    %6 = vector.load %arg3[%c0_4, %c0_5] : memref<128x128xf32, #tpu.memory_space<vmem>>, vector<128x128xf32>
    %cst = arith.constant dense<0.000000e+00> : vector<128x128xf32>
    %7 = tpu.matmul %4, %6, %cst {dimension_numbers = #tpu.dot_dimension_numbers<[1], [0], [0], [1], [0, 0, 1, 1], [], []>} : vector<128x128xf32>, vector<128x128xf32>, vector<128x128xf32> -> vector<128x128xf32>
    %8 = arith.addf %5, %7 : vector<128x128xf32>
    %c0_6 = arith.constant 0 : index
    %c0_7 = arith.constant 0 : index
    %9 = vector.load %arg6[%c0_6, %c0_7] : memref<128x128xf32, #tpu.memory_space<vmem>>, vector<128x128xf32>
    tpu.vector_store %arg6[%c0_6, %c0_7], %8 {strides = array<i32>} : memref<128x128xf32, #tpu.memory_space<vmem>>, vector<128x128xf32>,
    %c0_i32_8 = arith.constant 0 : i32
    %10 = arith.cmpi eq, %arg1, %c0_i32_8 : i32
    %11 = arith.extui %10 : i1 to i32
    %c0_i32_9 = arith.constant 0 : i32
    %12 = arith.cmpi ne, %11, %c0_i32_9 : i32
    scf.if %12 {
      %c0_10 = arith.constant 0 : index
      %c0_11 = arith.constant 0 : index
      %13 = vector.load %arg6[%c0_10, %c0_11] : memref<128x128xf32, #tpu.memory_space<vmem>>, vector<128x128xf32>
      %14 = arith.mulf %13, %13 : vector<128x128xf32>
      %c0_12 = arith.constant 0 : index
      %c0_13 = arith.constant 0 : index
      %15 = vector.load %arg4[%c0_12, %c0_13] : memref<128x128xf32, #tpu.memory_space<vmem>>, vector<128x128xf32>
      %cst_14 = arith.constant dense<0.000000e+00> : vector<128x128xf32>
      %16 = tpu.matmul %14, %15, %cst_14 {dimension_numbers = #tpu.dot_dimension_numbers<[1], [0], [0], [1], [0, 0, 1, 1], [], []>} : vector<128x128xf32>, vector<128x128xf32>, vector<128x128xf32> -> vector<128x128xf32>
      %17 = math.sqrt %16 : vector<128x128xf32>
      %cst_15 = arith.constant dense<0.000000e+00> : vector<128xf32>
      %18 = vector.multi_reduction <add>, %17, %cst_15 [0] : vector<128x128xf32> to vector<128xf32>
      %19 = vector.shape_cast %18 : vector<128xf32> to vector<1x128xf32>
      %20 = tpu.iota {dimensions = array<i32: 0>} : vector<8x128xi32>
      %c0_i32_16 = arith.constant 0 : i32
      %21 = vector.broadcast %c0_i32_16 : i32 to vector<8x128xi32>
      %22 = arith.cmpi eq, %20, %21 : vector<8x128xi32>
      %23 = vector.shape_cast %19 : vector<1x128xf32> to vector<1x128xf32>
      %24 = vector.broadcast %23 : vector<1x128xf32> to vector<8x128xf32>
      %cst_17 = arith.constant 0.000000e+00 : f32
      %25 = vector.broadcast %cst_17 : f32 to vector<8x128xf32>
      %26 = arith.select %22, %24, %25 : vector<8x128xi1>, vector<8x128xf32>
      %c0_18 = arith.constant 0 : index
      %c0_19 = arith.constant 0 : index
      %27 = vector.load %arg5[%c0_18, %c0_19] : memref<8x128xf32, #tpu.memory_space<vmem>>, vector<8x128xf32>
      tpu.vector_store %arg5[%c0_18, %c0_19], %26 {strides = array<i32>} : memref<8x128xf32, #tpu.memory_space<vmem>>, vector<8x128xf32>,
    } else {
    }
    return
  }
  func.func @transform_0(%arg0: i32, %arg1: i32) -> (i32, i32) {
    %c0_i32 = arith.constant 0 : i32
    return %arg0, %arg1 : i32, i32
  }
  func.func @transform_1(%arg0: i32, %arg1: i32) -> (i32, i32) {
    %c0_i32 = arith.constant 0 : i32
    %c0_i32_0 = arith.constant 0 : i32
    return %arg1, %c0_i32 : i32, i32
  }
  func.func @transform_2(%arg0: i32, %arg1: i32) -> (i32, i32) {
    %c0_i32 = arith.constant 0 : i32
    %c0_i32_0 = arith.constant 0 : i32
    %c0_i32_1 = arith.constant 0 : i32
    return %c0_i32, %c0_i32_0 : i32, i32
  }
  func.func @transform_3(%arg0: i32, %arg1: i32) -> (i32, i32) {
    %c0_i32 = arith.constant 0 : i32
    %c0_i32_0 = arith.constant 0 : i32
    return %arg0, %c0_i32 : i32, i32
  }
}

</mosaic_0001>

<llo_original>
// kernel: tpu_custom_call.1
$region0: #{tpu_custom_call.1}
  #allocation0 [shape = 'u32[]', space=smem, size = 0x4, offset = 0x4, fixed_abs, tag = 'smem constant byte address 0x4 - core index']
  #allocation1 [shape = 'u32[144,128]{1,0:T(1,128)}', space=vmem, size = 0x12000, scoped, tag = 'internal scratch']
  #allocation2 [shape = 'f32[128,128]{1,0:T(8,128)}', space=vmem, size = 0x10000, scoped, tag = 'scratch operand']
  %s0 = inlined_call_operand.hbm [shape: bf16[128,128], index: 0, kind: input, shape index: {}]
  %s1 = inlined_call_operand.hbm [shape: f32[128,128], index: 1, kind: input, shape index: {}]
  %s2 = inlined_call_operand.hbm [shape: f32[128,128], index: 2, kind: input, shape index: {}]
  %s3 = inlined_call_operand.hbm [shape: f32[8,128], index: 3, kind: output, shape index: {}]
  %s4 = sld [smem:[#allocation0]]
  $region42: #{tpu_custom_call.1} parent=0
    _
  %s6 = ssub.s32 1, %s4
  %s7 = scalar_select 0, %s6, %s4
  $region1: #{tpu_custom_call.1} parent=0
    #allocation3 [shape = 'u8[32768]{0}', space=vmem, size = 0x8000, scoped, tag = 'input window, operand 0, single buffered']
    #allocation4 [shape = 's32[1]{0}', space=sflag, size = 0x4, scoped, tag = 'scoped memory for tpu_custom_call.1']
    #allocation5 [shape = 's32[1]{0}', space=sflag, size = 0x4, scoped, tag = 'scoped memory for tpu_custom_call.1']
    #allocation6 [shape = 'u8[65536]{0}', space=vmem, size = 0x10000, scoped, tag = 'input window, operand 1, single buffered']
    #allocation7 [shape = 's32[1]{0}', space=sflag, size = 0x4, scoped, tag = 'scoped memory for tpu_custom_call.1']
    #allocation8 [shape = 'u8[65536]{0}', space=vmem, size = 0x10000, scoped, tag = 'input window, operand 2, single buffered']
    #allocation9 [shape = 'u8[4096]{0}', space=vmem, size = 0x1000, scoped, tag = 'output window, operand 0, single buffered']
    %8 = vsyncpa [#allocation4], 0
    %9 = vsyncpa [#allocation7], 0
    %10 = vsyncpa [#allocation5], 0
    // Predicated region
    $region2: #{tpu_custom_call.1} parent=1 // pred_check
      _
    $region3: #{tpu_custom_call.1} parent=1 // pred_check_branch
      %12 = sbr.rel (0) target = $region5
    $region4: #{tpu_custom_call.1} parent=1 // pred_region
      %s14 = ssub.s32 1024, 1024
      %15 = vsyncadd [#allocation4], %s14
      %s16 = sshll.u32 [#allocation3], 4
      %s17 = int_to_ptr.vmem [resolvable:$true] %s16
      %22 = dma.hbm_to_vmem [thread:$0]  %s0, 1024, %s17, [#allocation4], 64, 64, 4
    $region5: #{tpu_custom_call.1} parent=1 // pred_fallthru
      _
    // Predicated region
    $region6: #{tpu_custom_call.1} parent=1 // pred_check
      _
    $region7: #{tpu_custom_call.1} parent=1 // pred_check_branch
      %24 = sbr.rel (0) target = $region9
    $region8: #{tpu_custom_call.1} parent=1 // pred_region
      %s26 = ssub.s32 2048, 2048
      %27 = vsyncadd [#allocation7], %s26
      %s28 = sshll.u32 [#allocation6], 4
      %s29 = int_to_ptr.vmem [resolvable:$true] %s28
      %34 = dma.hbm_to_vmem [thread:$0]  %s1, 2048, %s29, [#allocation7], 128, 128, 8
    $region9: #{tpu_custom_call.1} parent=1 // pred_fallthru
      _
    // Predicated region
    $region10: #{tpu_custom_call.1} parent=1 // pred_check
      _
    $region11: #{tpu_custom_call.1} parent=1 // pred_check_branch
      %36 = sbr.rel (0) target = $region13
    $region12: #{tpu_custom_call.1} parent=1 // pred_region
      %s38 = ssub.s32 2048, 2048
      %39 = vsyncadd [#allocation7], %s38
      %s40 = sshll.u32 [#allocation8], 4
      %s41 = int_to_ptr.vmem [resolvable:$true] %s40
      %46 = dma.hbm_to_vmem [thread:$0]  %s2, 2048, %s41, [#allocation7], 128, 128, 8
    $region13: #{tpu_custom_call.1} parent=1 // pred_fallthru
      _
    // Predicated region
    $region14: #{tpu_custom_call.1} parent=1 // pred_check
      _
    $region15: #{tpu_custom_call.1} parent=1 // pred_check_branch
      %48 = sbr.rel (0) target = $region17
    $region16: #{tpu_custom_call.1} parent=1 // pred_region
      %49 = dma.done [#allocation4], 1024
    $region17: #{tpu_custom_call.1} parent=1 // pred_fallthru
      _
    // Predicated region
    $region18: #{tpu_custom_call.1} parent=1 // pred_check
      _
    $region19: #{tpu_custom_call.1} parent=1 // pred_check_branch
      %51 = sbr.rel (0) target = $region21
    $region20: #{tpu_custom_call.1} parent=1 // pred_region
      %52 = dma.done [#allocation7], 2048
    $region21: #{tpu_custom_call.1} parent=1 // pred_fallthru
      _
    // Predicated region
    $region22: #{tpu_custom_call.1} parent=1 // pred_check
      _
    $region23: #{tpu_custom_call.1} parent=1 // pred_check_branch
      %54 = sbr.rel (0) target = $region25
    $region24: #{tpu_custom_call.1} parent=1 // pred_region
      %55 = dma.done [#allocation7], 2048
    $region25: #{tpu_custom_call.1} parent=1 // pred_fallthru
      _
    %p56 = scmp.eq.s32.totalorder 0, 0
    // Predicated region
    $region26: #{tpu_custom_call.1} parent=1 // pred_check
      %p57 = pneg %p56
    $region27: #{tpu_custom_call.1} parent=1 // pred_check_branch
      %59 = sbr.rel (%p57) target = $region29
    $region28: #{tpu_custom_call.1} parent=1 // pred_region
      %60 = vst [vmem:[#allocation2] sm:$0xff] 0.0
      %61 = vst [vmem:[#allocation2 + $0x8] sm:$0xff] 0.0
      %62 = vst [vmem:[#allocation2 + $0x10] sm:$0xff] 0.0
      %63 = vst [vmem:[#allocation2 + $0x18] sm:$0xff] 0.0
      %64 = vst [vmem:[#allocation2 + $0x20] sm:$0xff] 0.0
      %65 = vst [vmem:[#allocation2 + $0x28] sm:$0xff] 0.0
      %66 = vst [vmem:[#allocation2 + $0x30] sm:$0xff] 0.0
      %67 = vst [vmem:[#allocation2 + $0x38] sm:$0xff] 0.0
      %68 = vst [vmem:[#allocation2 + $0x40] sm:$0xff] 0.0
      %69 = vst [vmem:[#allocation2 + $0x48] sm:$0xff] 0.0
      %70 = vst [vmem:[#allocation2 + $0x50] sm:$0xff] 0.0
      %71 = vst [vmem:[#allocation2 + $0x58] sm:$0xff] 0.0
      %72 = vst [vmem:[#allocation2 + $0x60] sm:$0xff] 0.0
      %73 = vst [vmem:[#allocation2 + $0x68] sm:$0xff] 0.0
      %74 = vst [vmem:[#allocation2 + $0x70] sm:$0xff] 0.0
      %75 = vst [vmem:[#allocation2 + $0x78] sm:$0xff] 0.0
    $region29: #{tpu_custom_call.1} parent=1 // pred_fallthru
      _
    %v76 = vld [vmem:[#allocation3] sm:$0xf]
    %v77 = vld [vmem:[#allocation3 + $0x4] sm:$0xf]
    %v78 = vld [vmem:[#allocation3 + $0x8] sm:$0xf]
    %v79 = vld [vmem:[#allocation3 + $0xc] sm:$0xf]
    %v80 = vld [vmem:[#allocation3 + $0x10] sm:$0xf]
    %v81 = vld [vmem:[#allocation3 + $0x14] sm:$0xf]
    %v82 = vld [vmem:[#allocation3 + $0x18] sm:$0xf]
    %v83 = vld [vmem:[#allocation3 + $0x1c] sm:$0xf]
    %v84 = vld [vmem:[#allocation3 + $0x20] sm:$0xf]
    %v85 = vld [vmem:[#allocation3 + $0x24] sm:$0xf]
    %v86 = vld [vmem:[#allocation3 + $0x28] sm:$0xf]
    %v87 = vld [vmem:[#allocation3 + $0x2c] sm:$0xf]
    %v88 = vld [vmem:[#allocation3 + $0x30] sm:$0xf]
    %v89 = vld [vmem:[#allocation3 + $0x34] sm:$0xf]
    %v90 = vld [vmem:[#allocation3 + $0x38] sm:$0xf]
    %v91 = vld [vmem:[#allocation3 + $0x3c] sm:$0xf]
    %v92 = vunpack.c.l.bf16 %v76
    %v93 = vunpack.c.l.bf16 %v77
    %v94 = vunpack.c.l.bf16 %v78
    %v95 = vunpack.c.l.bf16 %v79
    %v96 = vunpack.c.l.bf16 %v80
    %v97 = vunpack.c.l.bf16 %v81
    %v98 = vunpack.c.l.bf16 %v82
    %v99 = vunpack.c.l.bf16 %v83
    %v100 = vunpack.c.l.bf16 %v84
    %v101 = vunpack.c.l.bf16 %v85
    %v102 = vunpack.c.l.bf16 %v86
    %v103 = vunpack.c.l.bf16 %v87
    %v104 = vunpack.c.l.bf16 %v88
    %v105 = vunpack.c.l.bf16 %v89
    %v106 = vunpack.c.l.bf16 %v90
    %v107 = vunpack.c.l.bf16 %v91
    %v108 = vld [vmem:[#allocation2] sm:$0xff]
    %v109 = vld [vmem:[#allocation2 + $0x8] sm:$0xff]
    %v110 = vld [vmem:[#allocation2 + $0x10] sm:$0xff]
    %v111 = vld [vmem:[#allocation2 + $0x18] sm:$0xff]
    %v112 = vld [vmem:[#allocation2 + $0x20] sm:$0xff]
    %v113 = vld [vmem:[#allocation2 + $0x28] sm:$0xff]
    %v114 = vld [vmem:[#allocation2 + $0x30] sm:$0xff]
    %v115 = vld [vmem:[#allocation2 + $0x38] sm:$0xff]
    %v116 = vld [vmem:[#allocation2 + $0x40] sm:$0xff]
    %v117 = vld [vmem:[#allocation2 + $0x48] sm:$0xff]
    %v118 = vld [vmem:[#allocation2 + $0x50] sm:$0xff]
    %v119 = vld [vmem:[#allocation2 + $0x58] sm:$0xff]
    %v120 = vld [vmem:[#allocation2 + $0x60] sm:$0xff]
    %v121 = vld [vmem:[#allocation2 + $0x68] sm:$0xff]
    %v122 = vld [vmem:[#allocation2 + $0x70] sm:$0xff]
    %v123 = vld [vmem:[#allocation2 + $0x78] sm:$0xff]
    %v124 = vld [vmem:[#allocation6] sm:$0xff]
    %v125 = vld [vmem:[#allocation6 + $0x8] sm:$0xff]
    %v126 = vld [vmem:[#allocation6 + $0x10] sm:$0xff]
    %v127 = vld [vmem:[#allocation6 + $0x18] sm:$0xff]
    %v128 = vld [vmem:[#allocation6 + $0x20] sm:$0xff]
    %v129 = vld [vmem:[#allocation6 + $0x28] sm:$0xff]
    %v130 = vld [vmem:[#allocation6 + $0x30] sm:$0xff]
    %v131 = vld [vmem:[#allocation6 + $0x38] sm:$0xff]
    %v132 = vld [vmem:[#allocation6 + $0x40] sm:$0xff]
    %v133 = vld [vmem:[#allocation6 + $0x48] sm:$0xff]
    %v134 = vld [vmem:[#allocation6 + $0x50] sm:$0xff]
    %v135 = vld [vmem:[#allocation6 + $0x58] sm:$0xff]
    %v136 = vld [vmem:[#allocation6 + $0x60] sm:$0xff]
    %v137 = vld [vmem:[#allocation6 + $0x68] sm:$0xff]
    %v138 = vld [vmem:[#allocation6 + $0x70] sm:$0xff]
    %v139 = vld [vmem:[#allocation6 + $0x78] sm:$0xff]
    %140 = vmatprep.subr.mxu0 0.0
    %141 = vmatpush1.msra.mxu0 %v139
    %142 = vmatprep.subr.mxu0 0.0
    %143 = vmatpush1.msra.mxu0 %v138
    %144 = vmatprep.subr.mxu0 0.0
    %145 = vmatpush1.msra.mxu0 %v137
    %146 = vmatprep.subr.mxu0 0.0
    %147 = vmatpush1.msra.mxu0 %v136
    %148 = vmatprep.subr.mxu0 0.0
    %149 = vmatpush1.msra.mxu0 %v135
    %150 = vmatprep.subr.mxu0 0.0
    %151 = vmatpush1.msra.mxu0 %v134
    %152 = vmatprep.subr.mxu0 0.0
    %153 = vmatpush1.msra.mxu0 %v133
    %154 = vmatprep.subr.mxu0 0.0
    %155 = vmatpush1.msra.mxu0 %v132
    %156 = vmatprep.subr.mxu0 0.0
    %157 = vmatpush1.msra.mxu0 %v131
    %158 = vmatprep.subr.mxu0 0.0
    %159 = vmatpush1.msra.mxu0 %v130
    %160 = vmatprep.subr.mxu0 0.0
    %161 = vmatpush1.msra.mxu0 %v129
    %162 = vmatprep.subr.mxu0 0.0
    %163 = vmatpush1.msra.mxu0 %v128
    %164 = vmatprep.subr.mxu0 0.0
    %165 = vmatpush1.msra.mxu0 %v127
    %166 = vmatprep.subr.mxu0 0.0
    %167 = vmatpush1.msra.mxu0 %v126
    %168 = vmatprep.subr.mxu0 0.0
    %169 = vmatpush1.msra.mxu0 %v125
    %170 = vmatprep.subr.mxu0 0.0
    %171 = vmatpush1.msra.mxu0 %v124
    %172 = vmatprep.subr.mxu0 0.0
    %173 = vmatpush2.msra.mxu0 0.0
    %174 = vmatprep.subr.mxu0 0.0
    %175 = vmatpush2.msra.mxu0 0.0
    %176 = vmatprep.subr.mxu0 0.0
    %177 = vmatpush2.msra.mxu0 0.0
    %178 = vmatprep.subr.mxu0 0.0
    %179 = vmatpush2.msra.mxu0 0.0
    %180 = vmatprep.subr.mxu0 0.0
    %181 = vmatpush2.msra.mxu0 0.0
    %182 = vmatprep.subr.mxu0 0.0
    %183 = vmatpush2.msra.mxu0 0.0
    %184 = vmatprep.subr.mxu0 0.0
    %185 = vmatpush2.msra.mxu0 0.0
    %186 = vmatprep.subr.mxu0 0.0
    %187 = vmatpush2.msra.mxu0 0.0
    %188 = vmatprep.subr.mxu0 0.0
    %189 = vmatpush2.msra.mxu0 0.0
    %190 = vmatprep.subr.mxu0 0.0
    %191 = vmatpush2.msra.mxu0 0.0
    %192 = vmatprep.subr.mxu0 0.0
    %193 = vmatpush2.msra.mxu0 0.0
    %194 = vmatprep.subr.mxu0 0.0
    %195 = vmatpush2.msra.mxu0 0.0
    %196 = vmatprep.subr.mxu0 0.0
    %197 = vmatpush2.msra.mxu0 0.0
    %198 = vmatprep.subr.mxu0 0.0
    %199 = vmatpush2.msra.mxu0 0.0
    %200 = vmatprep.subr.mxu0 0.0
    %201 = vmatpush2.msra.mxu0 0.0
    %202 = vmatprep.subr.mxu0 0.0
    %203 = vmatpush2.msra.mxu0 0.0
    %204 = vmatprep.mubr.f32.mxu0 0.0
    %205 = vmatmul.mubr.f32.gmra.mxu0 %v92
    %v206 = vpop.f32.mrf.mxu0
    %v207 = vadd.f32 0.0, %v206
    %v208 = vpop.f32.mrf.mxu0
    %209 = vmatprep.mubr.f32.mxu0 0.0
    %210 = vmatmul.mubr.f32.gmra.mxu0 %v93
    %v211 = vpop.f32.mrf.mxu0
    %v212 = vadd.f32 0.0, %v211
    %v213 = vpop.f32.mrf.mxu0
    %214 = vmatprep.mubr.f32.mxu0 0.0
    %215 = vmatmul.mubr.f32.gmra.mxu0 %v94
    %v216 = vpop.f32.mrf.mxu0
    %v217 = vadd.f32 0.0, %v216
    %v218 = vpop.f32.mrf.mxu0
    %219 = vmatprep.mubr.f32.mxu0 0.0
    %220 = vmatmul.mubr.f32.gmra.mxu0 %v95
    %v221 = vpop.f32.mrf.mxu0
    %v222 = vadd.f32 0.0, %v221
    %v223 = vpop.f32.mrf.mxu0
    %224 = vmatprep.mubr.f32.mxu0 0.0
    %225 = vmatmul.mubr.f32.gmra.mxu0 %v96
    %v226 = vpop.f32.mrf.mxu0
    %v227 = vadd.f32 0.0, %v226
    %v228 = vpop.f32.mrf.mxu0
    %229 = vmatprep.mubr.f32.mxu0 0.0
    %230 = vmatmul.mubr.f32.gmra.mxu0 %v97
    %v231 = vpop.f32.mrf.mxu0
    %v232 = vadd.f32 0.0, %v231
    %v233 = vpop.f32.mrf.mxu0
    %234 = vmatprep.mubr.f32.mxu0 0.0
    %235 = vmatmul.mubr.f32.gmra.mxu0 %v98
    %v236 = vpop.f32.mrf.mxu0
    %v237 = vadd.f32 0.0, %v236
    %v238 = vpop.f32.mrf.mxu0
    %239 = vmatprep.mubr.f32.mxu0 0.0
    %240 = vmatmul.mubr.f32.gmra.mxu0 %v99
    %v241 = vpop.f32.mrf.mxu0
    %v242 = vadd.f32 0.0, %v241
    %v243 = vpop.f32.mrf.mxu0
    %244 = vmatprep.mubr.f32.mxu0 0.0
    %245 = vmatmul.mubr.f32.gmra.mxu0 %v100
    %v246 = vpop.f32.mrf.mxu0
    %v247 = vadd.f32 0.0, %v246
    %v248 = vpop.f32.mrf.mxu0
    %249 = vmatprep.mubr.f32.mxu0 0.0
    %250 = vmatmul.mubr.f32.gmra.mxu0 %v101
    %v251 = vpop.f32.mrf.mxu0
    %v252 = vadd.f32 0.0, %v251
    %v253 = vpop.f32.mrf.mxu0
    %254 = vmatprep.mubr.f32.mxu0 0.0
    %255 = vmatmul.mubr.f32.gmra.mxu0 %v102
    %v256 = vpop.f32.mrf.mxu0
    %v257 = vadd.f32 0.0, %v256
    %v258 = vpop.f32.mrf.mxu0
    %259 = vmatprep.mubr.f32.mxu0 0.0
    %260 = vmatmul.mubr.f32.gmra.mxu0 %v103
    %v261 = vpop.f32.mrf.mxu0
    %v262 = vadd.f32 0.0, %v261
    %v263 = vpop.f32.mrf.mxu0
    %264 = vmatprep.mubr.f32.mxu0 0.0
    %265 = vmatmul.mubr.f32.gmra.mxu0 %v104
    %v266 = vpop.f32.mrf.mxu0
    %v267 = vadd.f32 0.0, %v266
    %v268 = vpop.f32.mrf.mxu0
    %269 = vmatprep.mubr.f32.mxu0 0.0
    %270 = vmatmul.mubr.f32.gmra.mxu0 %v105
    %v271 = vpop.f32.mrf.mxu0
    %v272 = vadd.f32 0.0, %v271
    %v273 = vpop.f32.mrf.mxu0
    %274 = vmatprep.mubr.f32.mxu0 0.0
    %275 = vmatmul.mubr.f32.gmra.mxu0 %v106
    %v276 = vpop.f32.mrf.mxu0
    %v277 = vadd.f32 0.0, %v276
    %v278 = vpop.f32.mrf.mxu0
    %279 = vmatprep.mubr.f32.mxu0 0.0
    %280 = vmatmul.mubr.f32.gmra.mxu0 %v107
    %v281 = vpop.f32.mrf.mxu0
    %v282 = vadd.f32 0.0, %v281
    %v283 = vpop.f32.mrf.mxu0
    %284 = vdwg.mxu0
    %v285 = vadd.f32 %v108, %v207
    %v286 = vadd.f32 %v109, %v212
    %v287 = vadd.f32 %v110, %v217
    %v288 = vadd.f32 %v111, %v222
    %v289 = vadd.f32 %v112, %v227
    %v290 = vadd.f32 %v113, %v232
    %v291 = vadd.f32 %v114, %v237
    %v292 = vadd.f32 %v115, %v242
    %v293 = vadd.f32 %v116, %v247
    %v294 = vadd.f32 %v117, %v252
    %v295 = vadd.f32 %v118, %v257
    %v296 = vadd.f32 %v119, %v262
    %v297 = vadd.f32 %v120, %v267
    %v298 = vadd.f32 %v121, %v272
    %v299 = vadd.f32 %v122, %v277
    %v300 = vadd.f32 %v123, %v282
    %301 = vst [vmem:[#allocation2] sm:$0xff] %v285
    %302 = vst [vmem:[#allocation2 + $0x8] sm:$0xff] %v286
    %303 = vst [vmem:[#allocation2 + $0x10] sm:$0xff] %v287
    %304 = vst [vmem:[#allocation2 + $0x18] sm:$0xff] %v288
    %305 = vst [vmem:[#allocation2 + $0x20] sm:$0xff] %v289
    %306 = vst [vmem:[#allocation2 + $0x28] sm:$0xff] %v290
    %307 = vst [vmem:[#allocation2 + $0x30] sm:$0xff] %v291
    %308 = vst [vmem:[#allocation2 + $0x38] sm:$0xff] %v292
    %309 = vst [vmem:[#allocation2 + $0x40] sm:$0xff] %v293
    %310 = vst [vmem:[#allocation2 + $0x48] sm:$0xff] %v294
    %311 = vst [vmem:[#allocation2 + $0x50] sm:$0xff] %v295
    %312 = vst [vmem:[#allocation2 + $0x58] sm:$0xff] %v296
    %313 = vst [vmem:[#allocation2 + $0x60] sm:$0xff] %v297
    %314 = vst [vmem:[#allocation2 + $0x68] sm:$0xff] %v298
    %315 = vst [vmem:[#allocation2 + $0x70] sm:$0xff] %v299
    %316 = vst [vmem:[#allocation2 + $0x78] sm:$0xff] %v300
    // Predicated region
    $region30: #{tpu_custom_call.1} parent=1 // pred_check
      %p317 = pneg %p56
    $region31: #{tpu_custom_call.1} parent=1 // pred_check_branch
      %319 = sbr.rel (%p317) target = $region33
    $region32: #{tpu_custom_call.1} parent=1 // pred_region
      %v320 = vld [vmem:[#allocation2] sm:$0xff]
      %v321 = vld [vmem:[#allocation2 + $0x8] sm:$0xff]
      %v322 = vld [vmem:[#allocation2 + $0x10] sm:$0xff]
      %v323 = vld [vmem:[#allocation2 + $0x18] sm:$0xff]
      %v324 = vld [vmem:[#allocation2 + $0x20] sm:$0xff]
      %v325 = vld [vmem:[#allocation2 + $0x28] sm:$0xff]
      %v326 = vld [vmem:[#allocation2 + $0x30] sm:$0xff]
      %v327 = vld [vmem:[#allocation2 + $0x38] sm:$0xff]
      %v328 = vld [vmem:[#allocation2 + $0x40] sm:$0xff]
      %v329 = vld [vmem:[#allocation2 + $0x48] sm:$0xff]
      %v330 = vld [vmem:[#allocation2 + $0x50] sm:$0xff]
      %v331 = vld [vmem:[#allocation2 + $0x58] sm:$0xff]
      %v332 = vld [vmem:[#allocation2 + $0x60] sm:$0xff]
      %v333 = vld [vmem:[#allocation2 + $0x68] sm:$0xff]
      %v334 = vld [vmem:[#allocation2 + $0x70] sm:$0xff]
      %v335 = vld [vmem:[#allocation2 + $0x78] sm:$0xff]
      %v336 = vmul.f32 %v320, %v320
      %v337 = vmul.f32 %v321, %v321
      %v338 = vmul.f32 %v322, %v322
      %v339 = vmul.f32 %v323, %v323
      %v340 = vmul.f32 %v324, %v324
      %v341 = vmul.f32 %v325, %v325
      %v342 = vmul.f32 %v326, %v326
      %v343 = vmul.f32 %v327, %v327
      %v344 = vmul.f32 %v328, %v328
      %v345 = vmul.f32 %v329, %v329
      %v346 = vmul.f32 %v330, %v330
      %v347 = vmul.f32 %v331, %v331
      %v348 = vmul.f32 %v332, %v332
      %v349 = vmul.f32 %v333, %v333
      %v350 = vmul.f32 %v334, %v334
      %v351 = vmul.f32 %v335, %v335
      %v352 = vld [vmem:[#allocation8] sm:$0xff]
      %v353 = vld [vmem:[#allocation8 + $0x8] sm:$0xff]
      %v354 = vld [vmem:[#allocation8 + $0x10] sm:$0xff]
      %v355 = vld [vmem:[#allocation8 + $0x18] sm:$0xff]
      %v356 = vld [vmem:[#allocation8 + $0x20] sm:$0xff]
      %v357 = vld [vmem:[#allocation8 + $0x28] sm:$0xff]
      %v358 = vld [vmem:[#allocation8 + $0x30] sm:$0xff]
      %v359 = vld [vmem:[#allocation8 + $0x38] sm:$0xff]
      %v360 = vld [vmem:[#allocation8 + $0x40] sm:$0xff]
      %v361 = vld [vmem:[#allocation8 + $0x48] sm:$0xff]
      %v362 = vld [vmem:[#allocation8 + $0x50] sm:$0xff]
      %v363 = vld [vmem:[#allocation8 + $0x58] sm:$0xff]
      %v364 = vld [vmem:[#allocation8 + $0x60] sm:$0xff]
      %v365 = vld [vmem:[#allocation8 + $0x68] sm:$0xff]
      %v366 = vld [vmem:[#allocation8 + $0x70] sm:$0xff]
      %v367 = vld [vmem:[#allocation8 + $0x78] sm:$0xff]
      %368 = vmatprep.subr.mxu0 0.0
      %369 = vmatpush1.msra.mxu0 %v367
      %370 = vmatprep.subr.mxu0 0.0
      %371 = vmatpush1.msra.mxu0 %v366
      %372 = vmatprep.subr.mxu0 0.0
      %373 = vmatpush1.msra.mxu0 %v365
      %374 = vmatprep.subr.mxu0 0.0
      %375 = vmatpush1.msra.mxu0 %v364
      %376 = vmatprep.subr.mxu0 0.0
      %377 = vmatpush1.msra.mxu0 %v363
      %378 = vmatprep.subr.mxu0 0.0
      %379 = vmatpush1.msra.mxu0 %v362
      %380 = vmatprep.subr.mxu0 0.0
      %381 = vmatpush1.msra.mxu0 %v361
      %382 = vmatprep.subr.mxu0 0.0
      %383 = vmatpush1.msra.mxu0 %v360
      %384 = vmatprep.subr.mxu0 0.0
      %385 = vmatpush1.msra.mxu0 %v359
      %386 = vmatprep.subr.mxu0 0.0
      %387 = vmatpush1.msra.mxu0 %v358
      %388 = vmatprep.subr.mxu0 0.0
      %389 = vmatpush1.msra.mxu0 %v357
      %390 = vmatprep.subr.mxu0 0.0
      %391 = vmatpush1.msra.mxu0 %v356
      %392 = vmatprep.subr.mxu0 0.0
      %393 = vmatpush1.msra.mxu0 %v355
      %394 = vmatprep.subr.mxu0 0.0
      %395 = vmatpush1.msra.mxu0 %v354
      %396 = vmatprep.subr.mxu0 0.0
      %397 = vmatpush1.msra.mxu0 %v353
      %398 = vmatprep.subr.mxu0 0.0
      %399 = vmatpush1.msra.mxu0 %v352
      %400 = vmatprep.subr.mxu0 0.0
      %401 = vmatpush2.msra.mxu0 0.0
      %402 = vmatprep.subr.mxu0 0.0
      %403 = vmatpush2.msra.mxu0 0.0
      %404 = vmatprep.subr.mxu0 0.0
      %405 = vmatpush2.msra.mxu0 0.0
      %406 = vmatprep.subr.mxu0 0.0
      %407 = vmatpush2.msra.mxu0 0.0
      %408 = vmatprep.subr.mxu0 0.0
      %409 = vmatpush2.msra.mxu0 0.0
      %410 = vmatprep.subr.mxu0 0.0
      %411 = vmatpush2.msra.mxu0 0.0
      %412 = vmatprep.subr.mxu0 0.0
      %413 = vmatpush2.msra.mxu0 0.0
      %414 = vmatprep.subr.mxu0 0.0
      %415 = vmatpush2.msra.mxu0 0.0
      %416 = vmatprep.subr.mxu0 0.0
      %417 = vmatpush2.msra.mxu0 0.0
      %418 = vmatprep.subr.mxu0 0.0
      %419 = vmatpush2.msra.mxu0 0.0
      %420 = vmatprep.subr.mxu0 0.0
      %421 = vmatpush2.msra.mxu0 0.0
      %422 = vmatprep.subr.mxu0 0.0
      %423 = vmatpush2.msra.mxu0 0.0
      %424 = vmatprep.subr.mxu0 0.0
      %425 = vmatpush2.msra.mxu0 0.0
      %426 = vmatprep.subr.mxu0 0.0
      %427 = vmatpush2.msra.mxu0 0.0
      %428 = vmatprep.subr.mxu0 0.0
      %429 = vmatpush2.msra.mxu0 0.0
      %430 = vmatprep.subr.mxu0 0.0
      %431 = vmatpush2.msra.mxu0 0.0
      %432 = vmatprep.mubr.f32.mxu0 0.0
      %433 = vmatmul.mubr.f32.gmra.mxu0 %v336
      %v434 = vpop.f32.mrf.mxu0
      %v435 = vadd.f32 0.0, %v434
      %v436 = vpop.f32.mrf.mxu0
      %437 = vmatprep.mubr.f32.mxu0 0.0
      %438 = vmatmul.mubr.f32.gmra.mxu0 %v337
      %v439 = vpop.f32.mrf.mxu0
      %v440 = vadd.f32 0.0, %v439
      %v441 = vpop.f32.mrf.mxu0
      %442 = vmatprep.mubr.f32.mxu0 0.0
      %443 = vmatmul.mubr.f32.gmra.mxu0 %v338
      %v444 = vpop.f32.mrf.mxu0
      %v445 = vadd.f32 0.0, %v444
      %v446 = vpop.f32.mrf.mxu0
      %447 = vmatprep.mubr.f32.mxu0 0.0
      %448 = vmatmul.mubr.f32.gmra.mxu0 %v339
      %v449 = vpop.f32.mrf.mxu0
      %v450 = vadd.f32 0.0, %v449
      %v451 = vpop.f32.mrf.mxu0
      %452 = vmatprep.mubr.f32.mxu0 0.0
      %453 = vmatmul.mubr.f32.gmra.mxu0 %v340
      %v454 = vpop.f32.mrf.mxu0
      %v455 = vadd.f32 0.0, %v454
      %v456 = vpop.f32.mrf.mxu0
      %457 = vmatprep.mubr.f32.mxu0 0.0
      %458 = vmatmul.mubr.f32.gmra.mxu0 %v341
      %v459 = vpop.f32.mrf.mxu0
      %v460 = vadd.f32 0.0, %v459
      %v461 = vpop.f32.mrf.mxu0
      %462 = vmatprep.mubr.f32.mxu0 0.0
      %463 = vmatmul.mubr.f32.gmra.mxu0 %v342
      %v464 = vpop.f32.mrf.mxu0
      %v465 = vadd.f32 0.0, %v464
      %v466 = vpop.f32.mrf.mxu0
      %467 = vmatprep.mubr.f32.mxu0 0.0
      %468 = vmatmul.mubr.f32.gmra.mxu0 %v343
      %v469 = vpop.f32.mrf.mxu0
      %v470 = vadd.f32 0.0, %v469
      %v471 = vpop.f32.mrf.mxu0
      %472 = vmatprep.mubr.f32.mxu0 0.0
      %473 = vmatmul.mubr.f32.gmra.mxu0 %v344
      %v474 = vpop.f32.mrf.mxu0
      %v475 = vadd.f32 0.0, %v474
      %v476 = vpop.f32.mrf.mxu0
      %477 = vmatprep.mubr.f32.mxu0 0.0
      %478 = vmatmul.mubr.f32.gmra.mxu0 %v345
      %v479 = vpop.f32.mrf.mxu0
      %v480 = vadd.f32 0.0, %v479
      %v481 = vpop.f32.mrf.mxu0
      %482 = vmatprep.mubr.f32.mxu0 0.0
      %483 = vmatmul.mubr.f32.gmra.mxu0 %v346
      %v484 = vpop.f32.mrf.mxu0
      %v485 = vadd.f32 0.0, %v484
      %v486 = vpop.f32.mrf.mxu0
      %487 = vmatprep.mubr.f32.mxu0 0.0
      %488 = vmatmul.mubr.f32.gmra.mxu0 %v347
      %v489 = vpop.f32.mrf.mxu0
      %v490 = vadd.f32 0.0, %v489
      %v491 = vpop.f32.mrf.mxu0
      %492 = vmatprep.mubr.f32.mxu0 0.0
      %493 = vmatmul.mubr.f32.gmra.mxu0 %v348
      %v494 = vpop.f32.mrf.mxu0
      %v495 = vadd.f32 0.0, %v494
      %v496 = vpop.f32.mrf.mxu0
      %497 = vmatprep.mubr.f32.mxu0 0.0
      %498 = vmatmul.mubr.f32.gmra.mxu0 %v349
      %v499 = vpop.f32.mrf.mxu0
      %v500 = vadd.f32 0.0, %v499
      %v501 = vpop.f32.mrf.mxu0
      %502 = vmatprep.mubr.f32.mxu0 0.0
      %503 = vmatmul.mubr.f32.gmra.mxu0 %v350
      %v504 = vpop.f32.mrf.mxu0
      %v505 = vadd.f32 0.0, %v504
      %v506 = vpop.f32.mrf.mxu0
      %507 = vmatprep.mubr.f32.mxu0 0.0
      %508 = vmatmul.mubr.f32.gmra.mxu0 %v351
      %v509 = vpop.f32.mrf.mxu0
      %v510 = vadd.f32 0.0, %v509
      %v511 = vpop.f32.mrf.mxu0
      %512 = vdwg.mxu0
      %v513 = vrsqrt.pop %v435
      %v514 = vmul.f32 %v435, %v513
      %vm515 = vcmp.eq.f32.partialorder %v435, inf
      %v516 = vsel %vm515, %v435, %v514
      %vm517 = vcmp.eq.f32.partialorder %v435, 0.0
      %v518 = vand.u32 %v435, 2147483648
      %v519 = vsel %vm517, %v518, %v516
      %v520 = vrsqrt.pop %v440
      %v521 = vmul.f32 %v440, %v520
      %vm522 = vcmp.eq.f32.partialorder %v440, inf
      %v523 = vsel %vm522, %v440, %v521
      %vm524 = vcmp.eq.f32.partialorder %v440, 0.0
      %v525 = vand.u32 %v440, 2147483648
      %v526 = vsel %vm524, %v525, %v523
      %v527 = vrsqrt.pop %v445
      %v528 = vmul.f32 %v445, %v527
      %vm529 = vcmp.eq.f32.partialorder %v445, inf
      %v530 = vsel %vm529, %v445, %v528
      %vm531 = vcmp.eq.f32.partialorder %v445, 0.0
      %v532 = vand.u32 %v445, 2147483648
      %v533 = vsel %vm531, %v532, %v530
      %v534 = vrsqrt.pop %v450
      %v535 = vmul.f32 %v450, %v534
      %vm536 = vcmp.eq.f32.partialorder %v450, inf
      %v537 = vsel %vm536, %v450, %v535
      %vm538 = vcmp.eq.f32.partialorder %v450, 0.0
      %v539 = vand.u32 %v450, 2147483648
      %v540 = vsel %vm538, %v539, %v537
      %v541 = vrsqrt.pop %v455
      %v542 = vmul.f32 %v455, %v541
      %vm543 = vcmp.eq.f32.partialorder %v455, inf
      %v544 = vsel %vm543, %v455, %v542
      %vm545 = vcmp.eq.f32.partialorder %v455, 0.0
      %v546 = vand.u32 %v455, 2147483648
      %v547 = vsel %vm545, %v546, %v544
      %v548 = vrsqrt.pop %v460
      %v549 = vmul.f32 %v460, %v548
      %vm550 = vcmp.eq.f32.partialorder %v460, inf
      %v551 = vsel %vm550, %v460, %v549
      %vm552 = vcmp.eq.f32.partialorder %v460, 0.0
      %v553 = vand.u32 %v460, 2147483648
      %v554 = vsel %vm552, %v553, %v551
      %v555 = vrsqrt.pop %v465
      %v556 = vmul.f32 %v465, %v555
      %vm557 = vcmp.eq.f32.partialorder %v465, inf
      %v558 = vsel %vm557, %v465, %v556
      %vm559 = vcmp.eq.f32.partialorder %v465, 0.0
      %v560 = vand.u32 %v465, 2147483648
      %v561 = vsel %vm559, %v560, %v558
      %v562 = vrsqrt.pop %v470
      %v563 = vmul.f32 %v470, %v562
      %vm564 = vcmp.eq.f32.partialorder %v470, inf
      %v565 = vsel %vm564, %v470, %v563
      %vm566 = vcmp.eq.f32.partialorder %v470, 0.0
      %v567 = vand.u32 %v470, 2147483648
      %v568 = vsel %vm566, %v567, %v565
      %v569 = vrsqrt.pop %v475
      %v570 = vmul.f32 %v475, %v569
      %vm571 = vcmp.eq.f32.partialorder %v475, inf
      %v572 = vsel %vm571, %v475, %v570
      %vm573 = vcmp.eq.f32.partialorder %v475, 0.0
      %v574 = vand.u32 %v475, 2147483648
      %v575 = vsel %vm573, %v574, %v572
      %v576 = vrsqrt.pop %v480
      %v577 = vmul.f32 %v480, %v576
      %vm578 = vcmp.eq.f32.partialorder %v480, inf
      %v579 = vsel %vm578, %v480, %v577
      %vm580 = vcmp.eq.f32.partialorder %v480, 0.0
      %v581 = vand.u32 %v480, 2147483648
      %v582 = vsel %vm580, %v581, %v579
      %v583 = vrsqrt.pop %v485
      %v584 = vmul.f32 %v485, %v583
      %vm585 = vcmp.eq.f32.partialorder %v485, inf
      %v586 = vsel %vm585, %v485, %v584
      %vm587 = vcmp.eq.f32.partialorder %v485, 0.0
      %v588 = vand.u32 %v485, 2147483648
      %v589 = vsel %vm587, %v588, %v586
      %v590 = vrsqrt.pop %v490
      %v591 = vmul.f32 %v490, %v590
      %vm592 = vcmp.eq.f32.partialorder %v490, inf
      %v593 = vsel %vm592, %v490, %v591
      %vm594 = vcmp.eq.f32.partialorder %v490, 0.0
      %v595 = vand.u32 %v490, 2147483648
      %v596 = vsel %vm594, %v595, %v593
      %v597 = vrsqrt.pop %v495
      %v598 = vmul.f32 %v495, %v597
      %vm599 = vcmp.eq.f32.partialorder %v495, inf
      %v600 = vsel %vm599, %v495, %v598
      %vm601 = vcmp.eq.f32.partialorder %v495, 0.0
      %v602 = vand.u32 %v495, 2147483648
      %v603 = vsel %vm601, %v602, %v600
      %v604 = vrsqrt.pop %v500
      %v605 = vmul.f32 %v500, %v604
      %vm606 = vcmp.eq.f32.partialorder %v500, inf
      %v607 = vsel %vm606, %v500, %v605
      %vm608 = vcmp.eq.f32.partialorder %v500, 0.0
      %v609 = vand.u32 %v500, 2147483648
      %v610 = vsel %vm608, %v609, %v607
      %v611 = vrsqrt.pop %v505
      %v612 = vmul.f32 %v505, %v611
      %vm613 = vcmp.eq.f32.partialorder %v505, inf
      %v614 = vsel %vm613, %v505, %v612
      %vm615 = vcmp.eq.f32.partialorder %v505, 0.0
      %v616 = vand.u32 %v505, 2147483648
      %v617 = vsel %vm615, %v616, %v614
      %v618 = vrsqrt.pop %v510
      %v619 = vmul.f32 %v510, %v618
      %vm620 = vcmp.eq.f32.partialorder %v510, inf
      %v621 = vsel %vm620, %v510, %v619
      %vm622 = vcmp.eq.f32.partialorder %v510, 0.0
      %v623 = vand.u32 %v510, 2147483648
      %v624 = vsel %vm622, %v623, %v621
      %v625 = vadd.f32 %v519, %v526
      %v626 = vadd.f32 %v625, %v533
      %v627 = vadd.f32 %v626, %v540
      %v628 = vadd.f32 %v627, %v547
      %v629 = vadd.f32 %v628, %v554
      %v630 = vadd.f32 %v629, %v561
      %v631 = vadd.f32 %v630, %v568
      %v632 = vadd.f32 %v631, %v575
      %v633 = vadd.f32 %v632, %v582
      %v634 = vadd.f32 %v633, %v589
      %v635 = vadd.f32 %v634, %v596
      %v636 = vadd.f32 %v635, %v603
      %v637 = vadd.f32 %v636, %v610
      %v638 = vadd.f32 %v637, %v617
      %v639 = vadd.f32 %v638, %v624
      %v640 = vrot.slane %v639, 4
      %v641 = vadd.f32 %v639, %v640
      %v642 = vrot.slane %v641, 2
      %v643 = vadd.f32 %v641, %v642
      %v644 = vrot.slane %v643, 1
      %v645 = vadd.f32 %v643, %v644
      %v646 = vlaneseq
      %v647 = vshrl.u32 %v646, 7
      %vm648 = vcmp.eq.s32.totalorder %v647, 0
      %v649 = vsel %vm648, %v645, 0.0
      %650 = vst [vmem:[#allocation9] sm:$0xff] %v649
    $region33: #{tpu_custom_call.1} parent=1 // pred_fallthru
      _
    // Predicated region
    $region34: #{tpu_custom_call.1} parent=1 // pred_check
      _
    $region35: #{tpu_custom_call.1} parent=1 // pred_check_branch
      %652 = sbr.rel (0) target = $region37
    $region36: #{tpu_custom_call.1} parent=1 // pred_region
      %s654 = ssub.s32 128, 128
      %655 = vsyncadd [#allocation5], %s654
      %s657 = sshll.u32 [#allocation9], 4
      %s658 = int_to_ptr.vmem [resolvable:$true] %s657
      %660 = dma.vmem_to_hbm [thread:$0]  %s658, 128, %s3, [#allocation5]
    $region37: #{tpu_custom_call.1} parent=1 // pred_fallthru
      _
    // Predicated region
    $region38: #{tpu_custom_call.1} parent=1 // pred_check
      _
    $region39: #{tpu_custom_call.1} parent=1 // pred_check_branch
      %662 = sbr.rel (0) target = $region41
    $region40: #{tpu_custom_call.1} parent=1 // pred_region
      %663 = dma.done [#allocation5], 128
    $region41: #{tpu_custom_call.1} parent=1 // pred_fallthru
      _
    %664 = vsyncpa [#allocation4], 1
    %665 = vsyncpa [#allocation7], 1
    %666 = vsyncpa [#allocation5], 1

</llo_original>
